<compile_context>
chip_gen: v7x
topology: tpu7x:2x2x1
jax: 0.10.0
libtpu: 0.0.40
codegen_flags: <defaults>
</compile_context>

<pallas_src>
import functools

import jax
import jax.numpy as jnp
from jax.experimental import pallas as pl
from jax.experimental.pallas import tpu as pltpu


_LANE_ALIGN = 1024                      # pixel-tile alignment (multiple of 128)
_MAX_TILE = 128 * 1024                  # hard cap on pixels per DMA tile
_VMEM_TARGET = 16 * 1024 * 1024         # budget for input buffers + body temporaries
_VMEM_LIMIT = 48 * 1024 * 1024          # scoped VMEM limit (<= 64 MiB v7x physical)


# ---------------------------------------------------------------------------
# Fused kernel: per-class NLL partial sums + per-class pixel counts
#   block shapes:
#     t_ref   : (1, 1, T)       int32   target pixels (lane axis)
#     x_ref   : (1, C, T)       native  logits (classes on sublanes)
#     a_ref   : (1, 1, C, 128)  f32     A[c]   accumulator (resident over axis 2)
#     cnt_ref : (1, 1, C, 128)  i32     cnt[c] accumulator (resident over axis 2)
# ---------------------------------------------------------------------------
def _wce_kernel(t_ref, x_ref, a_ref, cnt_ref, *, num_classes, hw_total, needs_mask):
    @pl.when(pl.program_id(2) == 0)
    def _():
        a_ref[...] = jnp.zeros_like(a_ref)
        cnt_ref[...] = jnp.zeros_like(cnt_ref)

    x = x_ref[0].astype(jnp.float32)                               # (C, T) f32 (cast post-DMA)
    t = t_ref[0].astype(jnp.int32)                                 # (1, T)

    # numerically stable log-sum-exp over the C class sublanes
    m = jnp.max(x, axis=0, keepdims=True)                          # (1, T)
    lse = m + jnp.log(jnp.sum(jnp.exp(x - m), axis=0, keepdims=True))

    classes = jax.lax.broadcasted_iota(jnp.int32, x.shape, 0)
    onehot = classes == t                                          # (C, T) bool

    if needs_mask:
        # ragged last pixel tile: pixels at/after hw_total contribute nothing.
        tile_hw = x.shape[-1]
        tile_idx = pl.program_id(1) * pl.num_programs(2) + pl.program_id(2)
        lane = jax.lax.broadcasted_iota(jnp.int32, (1, tile_hw), 1)
        onehot = onehot & ((tile_idx * tile_hw + lane) < hw_total)

    # NOTE: targets outside [0, C) that are not ignore_index silently match no
    # class row (weight 0) instead of erroring like PyTorch's F.cross_entropy.
    contrib = jnp.where(onehot, lse - x, 0.0)                      # (C, T)

    a_part = jnp.sum(contrib, axis=1, keepdims=True)               # (C, 1) lane reduce
    c_part = jnp.sum(onehot.astype(jnp.int32), axis=1, keepdims=True)
    # lane-dense accumulator update (broadcast over all 128 lanes; wrapper reads lane 0)
    a_ref[...] += a_part[None, None]
    cnt_ref[...] += c_part[None, None]


# ---------------------------------------------------------------------------
# Wrapper (functional version of WeightedCrossEntropy.forward)
# ---------------------------------------------------------------------------
def weighted_cross_entropy(prediction, target, *, ignore_index, num_classes,
                           often_weight_prev=None, max_value=7.0,
                           max_tile_hw=None):
    """prediction: (N, C, H, W) float (NCHW, like PyTorch); target: (N, H, W) int."""
    N, C, H, W = prediction.shape
    assert C == num_classes
    HW = H * W

    if often_weight_prev is None:
        often_weight_prev = jnp.ones((num_classes,), jnp.float32)  # __init__: zero_() + 1

    # ---- VMEM-budget-aware pixel tiling (no host-side padding of the logits) ----
    itemsize = jnp.dtype(prediction.dtype).itemsize
    # 2x double-buffered input blocks + ~6 (C,T) f32 body temporaries + row temps
    per_pixel = 2 * (C * itemsize + 4) + (6 * C + 4) * 4
    cap = _VMEM_TARGET // per_pixel
    cap = max(_LANE_ALIGN, (cap // _LANE_ALIGN) * _LANE_ALIGN)
    cap = min(cap, _MAX_TILE)
    if max_tile_hw is not None:       # test / tuning override
        cap = max(_LANE_ALIGN, (min(cap, max_tile_hw) // _LANE_ALIGN) * _LANE_ALIGN)

    if HW <= cap:
        tile_hw = HW                  # full lane extent: always a legal block shape
        num_tiles = 1
    else:
        tile_hw = cap                 # multiple of 128; last tile is partial + masked
        num_tiles = pl.cdiv(HW, tile_hw)
    needs_mask = (num_tiles * tile_hw != HW)

    # extra parallel pixel-chunk axis so both v7x TensorCores are busy at any N
    P = 2 if (num_tiles > 1 and num_tiles % 2 == 0) else 1
    t_inner = num_tiles // P

    logits = prediction.reshape(N, C, HW)            # free view of NCHW bytes, native dtype
    tgt = target.reshape(N, 1, HW)
    if tgt.dtype != jnp.int32:
        # TODO(synk): ship uint8 targets straight to the kernel to cut target HBM traffic 4x.
        tgt = tgt.astype(jnp.int32)

    kernel = functools.partial(_wce_kernel, num_classes=num_classes,
                               hw_total=HW, needs_mask=needs_mask)

    a_part, cnt_part = pl.pallas_call(
        kernel,
        out_shape=(jax.ShapeDtypeStruct((N, P, num_classes, 128), jnp.float32),
                   jax.ShapeDtypeStruct((N, P, num_classes, 128), jnp.int32)),
        grid_spec=pltpu.PrefetchScalarGridSpec(
            num_scalar_prefetch=0,
            grid=(N, P, t_inner),
            in_specs=[
                pl.BlockSpec((1, 1, tile_hw), lambda n, p, i: (n, 0, p * t_inner + i)),
                pl.BlockSpec((1, C, tile_hw), lambda n, p, i: (n, 0, p * t_inner + i)),
            ],
            out_specs=[
                pl.BlockSpec((1, 1, num_classes, 128), lambda n, p, i: (n, p, 0, 0)),
                pl.BlockSpec((1, 1, num_classes, 128), lambda n, p, i: (n, p, 0, 0)),
            ],
        ),
        compiler_params=pltpu.CompilerParams(
            dimension_semantics=("parallel", "parallel", "arbitrary"),
            vmem_limit_bytes=_VMEM_LIMIT),
    )(tgt, logits)

    # all 128 accumulator lanes are identical -> read lane 0, reduce over (N, P)
    A = a_part[..., 0].sum(axis=(0, 1))                     # (C,) f32
    counts = cnt_part[..., 0].sum(axis=(0, 1))              # (C,) int32 (exact)

    # ---- per-class weight logic (tiny C-vector math, stays in JAX) ----
    weight = jnp.where(counts < 64 * 64 * N, max_value, 1.0)          # int32 comparison
    often = jnp.where(counts == 0, max_value, 1.0)
    often_weight = 0.9 * often_weight_prev + 0.1 * often
    class_weight = weight * often_weight

    # loss = sum_p w[y_p] * nll_p / sum_p w[y_p]   over non-ignored pixels,
    # regrouped per class: num = sum_c w[c] A[c], den = sum_c w[c] cnt[c].
    valid_c = (jnp.arange(num_classes) != ignore_index).astype(jnp.float32)
    cw = class_weight * valid_c
    num = jnp.sum(cw * A)
    den = jnp.sum(cw * counts.astype(jnp.float32))
    # Matches F.cross_entropy(..., weight, ignore_index, reduction='mean'):
    # an all-ignored batch gives 0/0 -> NaN, same as PyTorch.
    loss = num / den
    return loss, often_weight, class_weight


# ---------------------------------------------------------------------------
# Pure-JAX reference (mirrors the PyTorch forward)
# ---------------------------------------------------------------------------
def _reference(prediction, target, *, ignore_index, num_classes, max_value=7.0):
    N = prediction.shape[0]
    counts = jnp.array([jnp.sum(target == i) for i in range(num_classes)], jnp.float32)
    weight = jnp.where(counts < 64.0 * 64.0 * N, max_value, 1.0)
    often = jnp.where(counts == 0.0, max_value, 1.0)
    often_weight = 0.9 * jnp.ones((num_classes,)) + 0.1 * often
    cw = weight * often_weight
    logp = jax.nn.log_softmax(prediction.astype(jnp.float32), axis=1)
    valid = target != ignore_index
    tclip = jnp.where(valid, target, 0)
    nll = -jnp.take_along_axis(logp, tclip[:, None], axis=1)[:, 0]
    wpix = cw[tclip] * valid.astype(jnp.float32)
    return jnp.sum(wpix * nll) / jnp.sum(wpix)


if __name__ == "__main__":
    key = jax.random.PRNGKey(0)
    k1, k2, k3 = jax.random.split(key, 3)

    N, C = 2, 8
    ignore_index = 255

    # Case 1: small image -> single full-extent pixel tile, no masking.
    H, W = 16, 16
    prediction = jax.random.normal(k1, (N, C, H, W), jnp.float32)
    target = jax.random.randint(k2, (N, H, W), 0, C, dtype=jnp.int32)
    target = jnp.where(jax.random.uniform(k3, (N, H, W)) < 0.1, ignore_index, target)

    loss, _, _ = weighted_cross_entropy(
        prediction, target, ignore_index=ignore_index, num_classes=C)
    loss = jax.block_until_ready(loss)
    ref = _reference(prediction, target, ignore_index=ignore_index, num_classes=C)
    assert jnp.allclose(loss, ref, rtol=1e-5, atol=1e-5), (loss, ref)

    # Case 2: forces multi-tile grid, ragged-tail masking, and the P=2 parallel axis.
    H2, W2 = 48, 48
    p2 = jax.random.normal(k1, (N, C, H2, W2), jnp.float32)
    t2 = jax.random.randint(k2, (N, H2, W2), 0, C, dtype=jnp.int32)
    t2 = jnp.where(jax.random.uniform(k3, (N, H2, W2)) < 0.1, ignore_index, t2)

    loss2, _, _ = weighted_cross_entropy(
        p2, t2, ignore_index=ignore_index, num_classes=C, max_tile_hw=2048)
    loss2 = jax.block_until_ready(loss2)
    ref2 = _reference(p2, t2, ignore_index=ignore_index, num_classes=C)
    assert jnp.allclose(loss2, ref2, rtol=1e-5, atol=1e-5), (loss2, ref2)

    print("KERNEL_OK")
</pallas_src>

<mosaic_0001>
module attributes {stable_mosaic.version = 11 : i64} {
  func.func @_wce_kernel(%arg0: i32, %arg1: i32, %arg2: i32, %arg3: memref<1x1x256xi32, #tpu.memory_space<vmem>>, %arg4: memref<1x8x256xf32, #tpu.memory_space<vmem>>, %arg5: memref<1x1x8x128xf32, #tpu.memory_space<vmem>>, %arg6: memref<1x1x8x128xi32, #tpu.memory_space<vmem>>) attributes {dimension_semantics = [#tpu.dimension_semantics<parallel>, #tpu.dimension_semantics<parallel>, #tpu.dimension_semantics<arbitrary>], iteration_bounds = array<i64: 2, 1, 1>, scalar_prefetch = 0 : i64, scratch_operands = 0 : i64, tpu.core_type = #tpu.core_type<tc>, window_params = [{transform_indices = @transform_0, window_bounds = array<i64: 1, 1, 256>}, {transform_indices = @transform_1, window_bounds = array<i64: 1, 8, 256>}, {transform_indices = @transform_2, window_bounds = array<i64: 1, 1, 8, 128>}, {transform_indices = @transform_3, window_bounds = array<i64: 1, 1, 8, 128>}]} {
    %c0_i32 = arith.constant 0 : i32
    %0 = arith.cmpi eq, %arg2, %c0_i32 : i32
    %1 = arith.extui %0 : i1 to i32
    %c0_i32_0 = arith.constant 0 : i32
    %2 = arith.cmpi ne, %1, %c0_i32_0 : i32
    scf.if %2 {
      %cst_26 = arith.constant 0.000000e+00 : f32
      %38 = vector.broadcast %cst_26 : f32 to vector<1x1x8x128xf32>
      %c0_27 = arith.constant 0 : index
      %c0_28 = arith.constant 0 : index
      %c0_29 = arith.constant 0 : index
      %c0_30 = arith.constant 0 : index
      %39 = vector.load %arg5[%c0_27, %c0_28, %c0_29, %c0_30] : memref<1x1x8x128xf32, #tpu.memory_space<vmem>>, vector<1x1x8x128xf32>
      tpu.vector_store %arg5[%c0_27, %c0_28, %c0_29, %c0_30], %38 {strides = array<i32>} : memref<1x1x8x128xf32, #tpu.memory_space<vmem>>, vector<1x1x8x128xf32>,
      %c0_i32_31 = arith.constant 0 : i32
      %40 = vector.broadcast %c0_i32_31 : i32 to vector<1x1x8x128xi32>
      %c0_32 = arith.constant 0 : index
      %c0_33 = arith.constant 0 : index
      %c0_34 = arith.constant 0 : index
      %c0_35 = arith.constant 0 : index
      %41 = vector.load %arg6[%c0_32, %c0_33, %c0_34, %c0_35] : memref<1x1x8x128xi32, #tpu.memory_space<vmem>>, vector<1x1x8x128xi32>
      tpu.vector_store %arg6[%c0_32, %c0_33, %c0_34, %c0_35], %40 {strides = array<i32>} : memref<1x1x8x128xi32, #tpu.memory_space<vmem>>, vector<1x1x8x128xi32>,
    } else {
    }
    %c0 = arith.constant 0 : index
    %c0_1 = arith.constant 0 : index
    %c0_2 = arith.constant 0 : index
    %3 = vector.load %arg4[%c0, %c0_1, %c0_2] : memref<1x8x256xf32, #tpu.memory_space<vmem>>, vector<1x8x256xf32>
    %4 = vector.shape_cast %3 : vector<1x8x256xf32> to vector<8x256xf32>
    %c0_3 = arith.constant 0 : index
    %c0_4 = arith.constant 0 : index
    %c0_5 = arith.constant 0 : index
    %5 = vector.load %arg3[%c0_3, %c0_4, %c0_5] : memref<1x1x256xi32, #tpu.memory_space<vmem>>, vector<1x1x256xi32>
    %6 = vector.shape_cast %5 : vector<1x1x256xi32> to vector<1x256xi32>
    %cst = arith.constant dense<0xFF800000> : vector<256xf32>
    %7 = vector.multi_reduction <maximumf>, %4, %cst [0] : vector<8x256xf32> to vector<256xf32>
    %8 = vector.shape_cast %7 : vector<256xf32> to vector<1x256xf32>
    %9 = vector.broadcast %8 : vector<1x256xf32> to vector<8x256xf32>
    %10 = arith.subf %4, %9 : vector<8x256xf32>
    %11 = math.exp %10 : vector<8x256xf32>
    %cst_6 = arith.constant dense<0.000000e+00> : vector<256xf32>
    %12 = vector.multi_reduction <add>, %11, %cst_6 [0] : vector<8x256xf32> to vector<256xf32>
    %13 = vector.shape_cast %12 : vector<256xf32> to vector<1x256xf32>
    %14 = math.log %13 : vector<1x256xf32>
    %15 = arith.addf %8, %14 : vector<1x256xf32>
    %16 = tpu.iota {dimensions = array<i32: 0>} : vector<8x256xi32>
    %17 = vector.broadcast %6 : vector<1x256xi32> to vector<8x256xi32>
    %18 = arith.cmpi eq, %16, %17 : vector<8x256xi32>
    %19 = vector.broadcast %15 : vector<1x256xf32> to vector<8x256xf32>
    %20 = arith.subf %19, %4 : vector<8x256xf32>
    %cst_7 = arith.constant 0.000000e+00 : f32
    %21 = vector.broadcast %cst_7 : f32 to vector<8x256xf32>
    %22 = arith.select %18, %20, %21 : vector<8x256xi1>, vector<8x256xf32>
    %cst_8 = arith.constant dense<0.000000e+00> : vector<8xf32>
    %23 = vector.multi_reduction <add>, %22, %cst_8 [1] : vector<8x256xf32> to vector<8xf32>
    %24 = vector.shape_cast %23 : vector<8xf32> to vector<8x1xf32>
    %25 = arith.extui %18 : vector<8x256xi1> to vector<8x256xi32>
    %cst_9 = arith.constant dense<0> : vector<8xi32>
    %26 = vector.multi_reduction <add>, %25, %cst_9 [1] : vector<8x256xi32> to vector<8xi32>
    %27 = vector.shape_cast %26 : vector<8xi32> to vector<8x1xi32>
    %c0_10 = arith.constant 0 : index
    %c0_11 = arith.constant 0 : index
    %c0_12 = arith.constant 0 : index
    %c0_13 = arith.constant 0 : index
    %28 = vector.load %arg5[%c0_10, %c0_11, %c0_12, %c0_13] : memref<1x1x8x128xf32, #tpu.memory_space<vmem>>, vector<1x1x8x128xf32>
    %29 = vector.shape_cast %24 : vector<8x1xf32> to vector<1x1x8x1xf32>
    %30 = vector.broadcast %29 : vector<1x1x8x1xf32> to vector<1x1x8x128xf32>
    %31 = arith.addf %28, %30 : vector<1x1x8x128xf32>
    %c0_14 = arith.constant 0 : index
    %c0_15 = arith.constant 0 : index
    %c0_16 = arith.constant 0 : index
    %c0_17 = arith.constant 0 : index
    %32 = vector.load %arg5[%c0_14, %c0_15, %c0_16, %c0_17] : memref<1x1x8x128xf32, #tpu.memory_space<vmem>>, vector<1x1x8x128xf32>
    tpu.vector_store %arg5[%c0_14, %c0_15, %c0_16, %c0_17], %31 {strides = array<i32>} : memref<1x1x8x128xf32, #tpu.memory_space<vmem>>, vector<1x1x8x128xf32>,
    %c0_18 = arith.constant 0 : index
    %c0_19 = arith.constant 0 : index
    %c0_20 = arith.constant 0 : index
    %c0_21 = arith.constant 0 : index
    %33 = vector.load %arg6[%c0_18, %c0_19, %c0_20, %c0_21] : memref<1x1x8x128xi32, #tpu.memory_space<vmem>>, vector<1x1x8x128xi32>
    %34 = vector.shape_cast %27 : vector<8x1xi32> to vector<1x1x8x1xi32>
    %35 = vector.broadcast %34 : vector<1x1x8x1xi32> to vector<1x1x8x128xi32>
    %36 = arith.addi %33, %35 : vector<1x1x8x128xi32>
    %c0_22 = arith.constant 0 : index
    %c0_23 = arith.constant 0 : index
    %c0_24 = arith.constant 0 : index
    %c0_25 = arith.constant 0 : index
    %37 = vector.load %arg6[%c0_22, %c0_23, %c0_24, %c0_25] : memref<1x1x8x128xi32, #tpu.memory_space<vmem>>, vector<1x1x8x128xi32>
    tpu.vector_store %arg6[%c0_22, %c0_23, %c0_24, %c0_25], %36 {strides = array<i32>} : memref<1x1x8x128xi32, #tpu.memory_space<vmem>>, vector<1x1x8x128xi32>,
    return
  }
  func.func @transform_0(%arg0: i32, %arg1: i32, %arg2: i32) -> (i32, i32, i32) {
    %c1_i32 = arith.constant 1 : i32
    %0 = arith.muli %arg1, %c1_i32 : i32
    %1 = arith.addi %0, %arg2 : i32
    %c0_i32 = arith.constant 0 : i32
    %c0_i32_0 = arith.constant 0 : i32
    return %arg0, %c0_i32, %1 : i32, i32, i32
  }
  func.func @transform_1(%arg0: i32, %arg1: i32, %arg2: i32) -> (i32, i32, i32) {
    %c1_i32 = arith.constant 1 : i32
    %0 = arith.muli %arg1, %c1_i32 : i32
    %1 = arith.addi %0, %arg2 : i32
    %c0_i32 = arith.constant 0 : i32
    %c0_i32_0 = arith.constant 0 : i32
    return %arg0, %c0_i32, %1 : i32, i32, i32
  }
  func.func @transform_2(%arg0: i32, %arg1: i32, %arg2: i32) -> (i32, i32, i32, i32) {
    %c0_i32 = arith.constant 0 : i32
    %c0_i32_0 = arith.constant 0 : i32
    %c0_i32_1 = arith.constant 0 : i32
    return %arg0, %arg1, %c0_i32, %c0_i32_0 : i32, i32, i32, i32
  }
  func.func @transform_3(%arg0: i32, %arg1: i32, %arg2: i32) -> (i32, i32, i32, i32) {
    %c0_i32 = arith.constant 0 : i32
    %c0_i32_0 = arith.constant 0 : i32
    %c0_i32_1 = arith.constant 0 : i32
    return %arg0, %arg1, %c0_i32, %c0_i32_0 : i32, i32, i32, i32
  }
}

</mosaic_0001>

<llo_original>
// kernel: tpu_custom_call.1
$region0: #{tpu_custom_call.1}
  #allocation0 [shape = 'u32[]', space=smem, size = 0x4, offset = 0x4, fixed_abs, tag = 'smem constant byte address 0x4 - core index']
  #allocation1 [shape = 'u32[144,128]{1,0:T(1,128)}', space=vmem, size = 0x12000, scoped, tag = 'internal scratch']
  %s0 = inlined_call_operand.hbm [shape: s32[2,1,256], index: 0, kind: input, shape index: {}]
  %s1 = inlined_call_operand.hbm [shape: f32[2,8,256], index: 1, kind: input, shape index: {}]
  %s2 = inlined_call_operand.hbm [shape: f32[2,1,8,128], index: 2, kind: output, shape index: {0}]
  %s3 = inlined_call_operand.hbm [shape: s32[2,1,8,128], index: 3, kind: output, shape index: {1}]
  %4 = xla_tuple %s2, %s3
  %s5 = sld [smem:[#allocation0]]
  $region61: #{tpu_custom_call.1} parent=0
    _
  %s7 = ssub.s32 1, %s5
  %s8 = scalar_select 0, %s7, %s5
  $region1: #{tpu_custom_call.1} parent=0
    #allocation2 [shape = 'u8[2048]{0}', space=vmem, size = 0x800, scoped, tag = 'input window, operand 0']
    #allocation3 [shape = 's32[2]{0}', space=sflag, size = 0x8, scoped, tag = 'scoped memory for tpu_custom_call.1']
    #allocation4 [shape = 's32[2]{0}', space=sflag, size = 0x8, scoped, tag = 'scoped memory for tpu_custom_call.1']
    #allocation5 [shape = 'u8[16384]{0}', space=vmem, size = 0x4000, scoped, tag = 'input window, operand 1']
    #allocation6 [shape = 's32[2]{0}', space=sflag, size = 0x8, scoped, tag = 'scoped memory for tpu_custom_call.1']
    #allocation7 [shape = 'u8[8192]{0}', space=vmem, size = 0x2000, scoped, tag = 'output window, operand 0']
    #allocation8 [shape = 'u8[8192]{0}', space=vmem, size = 0x2000, scoped, tag = 'output window, operand 1']
    #allocation9 [shape = 's32[2]{0}', space=sflag, size = 0x8, scoped, tag = 'scoped memory for tpu_custom_call.1']
    %9 = vsyncpa [#allocation3], 0
    %s10 = scalar_lea.sflag [#allocation3], 1
    %11 = vsyncpa %s10, 0
    %12 = vsyncpa [#allocation6], 0
    %s13 = scalar_lea.sflag [#allocation6], 1
    %14 = vsyncpa %s13, 0
    %15 = vsyncpa [#allocation4], 0
    %s16 = scalar_lea.sflag [#allocation4], 1
    %17 = vsyncpa %s16, 0
    %18 = vsyncpa [#allocation9], 0
    %s19 = scalar_lea.sflag [#allocation9], 1
    %20 = vsyncpa %s19, 0
    loop: start=0, step=1, limit=4
    $region2: #{tpu_custom_call.1} parent=1 // loop_pre_header
      _
    $region3: #{tpu_custom_call.1} parent=1 // loop_header
      %s22 = sphi 0, %s26
      %p23 = scmp.ge.s32.totalorder %s22, 4
      %s29 = sphi 0, %s48
      %s30 = sphi 0, %s44
      %s31 = sphi 0, %s40
      %s32 = sphi 0, %s29
      %s33 = sphi 0, %s30
      %s34 = sphi 0, %s31
      %s35 = sphi 0, %s32
      %s36 = sphi 0, %s33
      %s37 = sphi 0, %s34
      %s55 = sphi 0, %s57
      %s58 = sphi 0, %s55
      %s59 = sphi 0, %s58
      %s75 = sphi 0, %s59
      %s85 = sphi 0, %s87
      %s88 = sphi 0, %s85
      %s89 = sphi 0, %s88
      %s105 = sphi 0, %s89
      %s113 = sphi 0, %s115
      %s116 = sphi 0, %s113
      %s117 = sphi 0, %s116
      %s133 = sphi 0, %s117
      %s141 = sphi 0, %s143
      %s144 = sphi 0, %s141
      %s145 = sphi 0, %s144
      %s161 = sphi 0, %s145
    $region4: #{tpu_custom_call.1} parent=1 // loop_header_branch
      %25 = sbr.rel (%p23) target = $region8
    $region5: #{tpu_custom_call.1} parent=1 // loop_body
      %s27 = ssub.s32 %s22, 1
      %s28 = ssub.s32 %s22, 2
      %s38 = sadd.s32 1, %s31
      %p39 = scmp.ge.s32.totalorder %s38, 1
      %s40 = scalar_select %p39, 0, %s38
      %s41 = sadd.s32 1, %s30
      %s42 = scalar_select %p39, %s41, %s30
      %p43 = scmp.ge.s32.totalorder %s42, 1
      %s44 = scalar_select %p43, 0, %s42
      %s45 = sadd.s32 1, %s29
      %s46 = scalar_select %p43, %s45, %s29
      %p47 = scmp.ge.s32.totalorder %s46, 2
      %s48 = scalar_select %p47, 0, %s46
      %s49 = sadd.s32 %s30, %s31
      %s50 = sadd.s32 %s44, %s40
      %s51 = ssub.s32 %s29, %s48
      %s52 = ssub.s32 %s49, %s50
      %s53 = sor.u32 %s51, %s52
      %p54 = scmp.eq.s32.totalorder %s53, 0
      %s56 = sadd.s32 %s55, 1
      %s57 = scalar_select %p54, %s55, %s56
      %p60 = pneg %p54
      %p61 = scmp.eq.s32.totalorder %s22, 1
      %p62 = por %p60, %p61
      %p63 = scmp.ne.s32.totalorder %s55, %s58
      %p64 = scmp.eq.s32.totalorder %s22, 0
      %p65 = por %p63, %p64
      %p66 = scmp.ne.s32.totalorder %s55, %s58
      %p67 = scmp.eq.s32.totalorder %s27, 1
      %p68 = por %p66, %p67
      %p69 = scmp.ne.s32.totalorder %s58, %s59
      %p70 = scmp.eq.s32.totalorder %s27, 0
      %p71 = por %p69, %p70
      %p72 = scmp.ne.s32.totalorder %s58, %s59
      %p73 = scmp.eq.s32.totalorder %s28, 1
      %p74 = por %p72, %p73
      %p76 = scmp.ne.s32.totalorder %s59, %s75
      %p77 = scmp.eq.s32.totalorder %s28, 0
      %p78 = por %p76, %p77
      %s79 = sadd.s32 %s30, %s31
      %s80 = sadd.s32 %s44, %s40
      %s81 = ssub.s32 %s29, %s48
      %s82 = ssub.s32 %s79, %s80
      %s83 = sor.u32 %s81, %s82
      %p84 = scmp.eq.s32.totalorder %s83, 0
      %s86 = sadd.s32 %s85, 1
      %s87 = scalar_select %p84, %s85, %s86
      %p90 = pneg %p84
      %p91 = scmp.eq.s32.totalorder %s22, 1
      %p92 = por %p90, %p91
      %p93 = scmp.ne.s32.totalorder %s85, %s88
      %p94 = scmp.eq.s32.totalorder %s22, 0
      %p95 = por %p93, %p94
      %p96 = scmp.ne.s32.totalorder %s85, %s88
      %p97 = scmp.eq.s32.totalorder %s27, 1
      %p98 = por %p96, %p97
      %p99 = scmp.ne.s32.totalorder %s88, %s89
      %p100 = scmp.eq.s32.totalorder %s27, 0
      %p101 = por %p99, %p100
      %p102 = scmp.ne.s32.totalorder %s88, %s89
      %p103 = scmp.eq.s32.totalorder %s28, 1
      %p104 = por %p102, %p103
      %p106 = scmp.ne.s32.totalorder %s89, %s105
      %p107 = scmp.eq.s32.totalorder %s28, 0
      %p108 = por %p106, %p107
      %s109 = ssub.s32 %s29, %s48
      %s110 = ssub.s32 %s30, %s44
      %s111 = sor.u32 %s109, %s110
      %p112 = scmp.eq.s32.totalorder %s111, 0
      %s114 = sadd.s32 %s113, 1
      %s115 = scalar_select %p112, %s113, %s114
      %p118 = pneg %p112
      %p119 = scmp.eq.s32.totalorder %s22, 1
      %p120 = por %p118, %p119
      %p121 = scmp.ne.s32.totalorder %s113, %s116
      %p122 = scmp.eq.s32.totalorder %s22, 0
      %p123 = por %p121, %p122
      %p124 = scmp.ne.s32.totalorder %s113, %s116
      %p125 = scmp.eq.s32.totalorder %s27, 1
      %p126 = por %p124, %p125
      %p127 = scmp.ne.s32.totalorder %s116, %s117
      %p128 = scmp.eq.s32.totalorder %s27, 0
      %p129 = por %p127, %p128
      %p130 = scmp.ne.s32.totalorder %s116, %s117
      %p131 = scmp.eq.s32.totalorder %s28, 1
      %p132 = por %p130, %p131
      %p134 = scmp.ne.s32.totalorder %s117, %s133
      %p135 = scmp.eq.s32.totalorder %s28, 0
      %p136 = por %p134, %p135
      %s137 = ssub.s32 %s29, %s48
      %s138 = ssub.s32 %s30, %s44
      %s139 = sor.u32 %s137, %s138
      %p140 = scmp.eq.s32.totalorder %s139, 0
      %s142 = sadd.s32 %s141, 1
      %s143 = scalar_select %p140, %s141, %s142
      %p146 = pneg %p140
      %p147 = scmp.eq.s32.totalorder %s22, 1
      %p148 = por %p146, %p147
      %p149 = scmp.ne.s32.totalorder %s141, %s144
      %p150 = scmp.eq.s32.totalorder %s22, 0
      %p151 = por %p149, %p150
      %p152 = scmp.ne.s32.totalorder %s141, %s144
      %p153 = scmp.eq.s32.totalorder %s27, 1
      %p154 = por %p152, %p153
      %p155 = scmp.ne.s32.totalorder %s144, %s145
      %p156 = scmp.eq.s32.totalorder %s27, 0
      %p157 = por %p155, %p156
      %p158 = scmp.ne.s32.totalorder %s144, %s145
      %p159 = scmp.eq.s32.totalorder %s28, 1
      %p160 = por %p158, %p159
      %p162 = scmp.ne.s32.totalorder %s145, %s161
      %p163 = scmp.eq.s32.totalorder %s28, 0
      %p164 = por %p162, %p163
      %p165 = scmp.le.s32.totalorder 1, %s22
      %p166 = scmp.lt.s32.totalorder %s22, 3
      %p167 = pnand %p165, %p166
      %p168 = pneg %p167
      // Predicated region
      $region9: #{tpu_custom_call.1} parent=5 // pred_check
        _
      $region10: #{tpu_custom_call.1} parent=5 // pred_check_branch
        %170 = sbr.rel (%p167) target = $region12
      $region11: #{tpu_custom_call.1} parent=5 // pred_region
        %s171 = ssub.s32 %s22, 1
      $region12: #{tpu_custom_call.1} parent=5 // pred_fallthru
        _
      %p172 = scmp.lt.s32.totalorder %s22, 2
      // Predicated region
      $region13: #{tpu_custom_call.1} parent=5 // pred_check
        %p173 = pneg %p172
      $region14: #{tpu_custom_call.1} parent=5 // pred_check_branch
        %175 = sbr.rel (%p173) target = $region16
      $region15: #{tpu_custom_call.1} parent=5 // pred_region
        // Predicated region
        $region17: #{tpu_custom_call.1} parent=15 // pred_check
          %p176 = pneg %p65
        $region18: #{tpu_custom_call.1} parent=15 // pred_check_branch
          %178 = sbr.rel (%p176) target = $region20
        $region19: #{tpu_custom_call.1} parent=15 // pred_region
          %s179 = sand.u32 %s55, 1
          %s180 = scalar_lea.sflag [#allocation3], %s179
          %s181 = sand.u32 %s55, 1
          %s182 = smul.addr %s181, 2
          %s183 = scalar_lea.vmem [#allocation2], %s182
          %s184 = sadd.s32 %s30, %s31
          %s185 = smul.u32 2, %s184
          %s187 = ssub.s32 32, 32
          %188 = vsyncadd %s180, %s187
          %s189 = smul.addr %s29, 2
          %s190 = sadd.s32 %s185, %s189
          %s191 = smul.addr %s190, 16
          %s192 = scalar_lea.hbm %s0, %s191
          %s194 = sshll.u32 %s183, 4
          %s195 = int_to_ptr.vmem [resolvable:$true] %s194
          %197 = dma.hbm_to_vmem [thread:$0]  %s192, 32, %s195, %s180
        $region20: #{tpu_custom_call.1} parent=15 // pred_fallthru
          _
        // Predicated region
        $region21: #{tpu_custom_call.1} parent=15 // pred_check
          %p198 = pneg %p95
        $region22: #{tpu_custom_call.1} parent=15 // pred_check_branch
          %200 = sbr.rel (%p198) target = $region24
        $region23: #{tpu_custom_call.1} parent=15 // pred_region
          %s201 = sand.u32 %s85, 1
          %s202 = scalar_lea.sflag [#allocation6], %s201
          %s203 = sand.u32 %s85, 1
          %s204 = smul.addr %s203, 16
          %s205 = scalar_lea.vmem [#allocation5], %s204
          %s206 = sadd.s32 %s30, %s31
          %s207 = smul.u32 2, %s206
          %s209 = ssub.s32 256, 256
          %210 = vsyncadd %s202, %s209
          %s211 = smul.addr %s29, 2
          %s212 = sadd.s32 %s207, %s211
          %s213 = smul.addr %s212, 128
          %s214 = scalar_lea.hbm %s1, %s213
          %s216 = sshll.u32 %s205, 4
          %s217 = int_to_ptr.vmem [resolvable:$true] %s216
          %219 = dma.hbm_to_vmem [thread:$0]  %s214, 256, %s217, %s202
        $region24: #{tpu_custom_call.1} parent=15 // pred_fallthru
          _
      $region16: #{tpu_custom_call.1} parent=5 // pred_fallthru
        _
      %p220 = scmp.le.s32.totalorder 1, %s22
      %p221 = scmp.lt.s32.totalorder %s22, 3
      %p222 = pnand %p220, %p221
      %p223 = pneg %p222
      // Predicated region
      $region25: #{tpu_custom_call.1} parent=5 // pred_check
        _
      $region26: #{tpu_custom_call.1} parent=5 // pred_check_branch
        %225 = sbr.rel (%p222) target = $region28
      $region27: #{tpu_custom_call.1} parent=5 // pred_region
        %s226 = ssub.s32 %s22, 1
        %s227 = sand.u32 %s58, 1
        %s228 = scalar_lea.sflag [#allocation3], %s227
        %s229 = sand.u32 %s58, 1
        %s230 = smul.addr %s229, 2
        %s231 = scalar_lea.vmem [#allocation2], %s230
        // Predicated region
        $region29: #{tpu_custom_call.1} parent=27 // pred_check
          %p232 = pneg %p71
        $region30: #{tpu_custom_call.1} parent=27 // pred_check_branch
          %234 = sbr.rel (%p232) target = $region32
        $region31: #{tpu_custom_call.1} parent=27 // pred_region
          %235 = dma.done %s228, 32
        $region32: #{tpu_custom_call.1} parent=27 // pred_fallthru
          _
        %s236 = sand.u32 %s88, 1
        %s237 = scalar_lea.sflag [#allocation6], %s236
        %s238 = sand.u32 %s88, 1
        %s239 = smul.addr %s238, 16
        %s240 = scalar_lea.vmem [#allocation5], %s239
        // Predicated region
        $region33: #{tpu_custom_call.1} parent=27 // pred_check
          %p241 = pneg %p101
        $region34: #{tpu_custom_call.1} parent=27 // pred_check_branch
          %243 = sbr.rel (%p241) target = $region36
        $region35: #{tpu_custom_call.1} parent=27 // pred_region
          %244 = dma.done %s237, 256
        $region36: #{tpu_custom_call.1} parent=27 // pred_fallthru
          _
        %s245 = sand.u32 %s58, 1
        %s246 = scalar_lea.sflag [#allocation3], %s245
        %s247 = sand.u32 %s58, 1
        %s248 = smul.addr %s247, 2
        %s249 = scalar_lea.vmem [#allocation2], %s248
        %p250 = pneg %p71
        %p251 = pneg %p68
        %s252 = sand.u32 %s88, 1
        %s253 = scalar_lea.sflag [#allocation6], %s252
        %s254 = sand.u32 %s88, 1
        %s255 = smul.addr %s254, 16
        %s256 = scalar_lea.vmem [#allocation5], %s255
        %p257 = pneg %p101
        %p258 = pneg %p98
        %p259 = pneg %p129
        %p260 = pneg %p126
        %s261 = sand.u32 %s116, 1
        %s262 = scalar_lea.sflag [#allocation4], %s261
        %s263 = sand.u32 %s116, 1
        %s264 = smul.addr %s263, 8
        %s265 = scalar_lea.vmem [#allocation7], %s264
        %p266 = pneg %p157
        %p267 = pneg %p154
        %s268 = sand.u32 %s144, 1
        %s269 = scalar_lea.sflag [#allocation9], %s268
        %s270 = sand.u32 %s144, 1
        %s271 = smul.addr %s270, 8
        %s272 = scalar_lea.vmem [#allocation8], %s271
        %s273 = sadd.s32 %s33, %s34
        %s274 = smul.u32 2, %s273
        %s275 = sadd.s32 %s33, %s34
        %s276 = smul.u32 2, %s275
        %p277 = scmp.eq.s32.totalorder %s34, 0
        // Predicated region
        $region37: #{tpu_custom_call.1} parent=27 // pred_check
          %p278 = pneg %p277
        $region38: #{tpu_custom_call.1} parent=27 // pred_check_branch
          %280 = sbr.rel (%p278) target = $region40
        $region39: #{tpu_custom_call.1} parent=27 // pred_region
          %281 = vst [vmem:[%s265] sm:$0xff] 0.0
          %282 = vst [vmem:[%s272] sm:$0xff] 0
        $region40: #{tpu_custom_call.1} parent=27 // pred_fallthru
          _
        %v283 = vld [vmem:[%s240] sm:$0xff]
        %v284 = vld [vmem:[%s240 + $0x8] sm:$0xff]
        %v285 = vld [vmem:[%s231] sm:$0x3]
        %v286 = vrot.slane %v283, 4
        %v287 = vmax.f32 %v283, %v286
        %v288 = vrot.slane %v287, 2
        %v289 = vmax.f32 %v287, %v288
        %v290 = vrot.slane %v289, 1
        %v291 = vmax.f32 %v289, %v290
        %v292 = vrot.slane %v284, 4
        %v293 = vmax.f32 %v284, %v292
        %v294 = vrot.slane %v293, 2
        %v295 = vmax.f32 %v293, %v294
        %v296 = vrot.slane %v295, 1
        %v297 = vmax.f32 %v295, %v296
        %v298 = vsub.f32 %v283, %v291
        %v299 = vsub.f32 %v284, %v297
        %v300 = vmul.f32 %v298, 1.442695
        %v301 = vpow.pop %v300
        %v302 = vmul.f32 %v299, 1.442695
        %v303 = vpow.pop %v302
        %v304 = vrot.slane %v301, 4
        %v305 = vadd.f32 %v301, %v304
        %v306 = vrot.slane %v305, 2
        %v307 = vadd.f32 %v305, %v306
        %v308 = vrot.slane %v307, 1
        %v309 = vadd.f32 %v307, %v308
        %v310 = vrot.slane %v303, 4
        %v311 = vadd.f32 %v303, %v310
        %v312 = vrot.slane %v311, 2
        %v313 = vadd.f32 %v311, %v312
        %v314 = vrot.slane %v313, 1
        %v315 = vadd.f32 %v313, %v314
        %v316 = vlog2.pop %v309
        %v317 = vmul.f32 %v316, 0.6931472
        %v318 = vlog2.pop %v315
        %v319 = vmul.f32 %v318, 0.6931472
        %v320 = vadd.f32 %v291, %v317
        %v321 = vadd.f32 %v297, %v319
        %v322 = vlaneseq
        %v323 = vshrl.u32 %v322, 7
        %v324 = vlaneseq
        %v325 = vshrl.u32 %v324, 7
        %v326 = vsub.s32 0, %v325
        %v327 = vrot.slane %v285, %v326
        %v328 = vlaneseq
        %v329 = vshrl.u32 %v328, 7
        %v330 = vsub.s32 1, %v329
        %v331 = vrot.slane %v285, %v330
        %vm332 = vcmp.eq.s32.totalorder %v323, %v327
        %vm333 = vcmp.eq.s32.totalorder %v323, %v331
        %v334 = vsub.f32 %v320, %v283
        %v335 = vsub.f32 %v321, %v284
        %v336 = vsel %vm332, %v334, 0.0
        %v337 = vsel %vm333, %v335, 0.0
        %v338 = vadd.f32 %v336, %v337
        %339 = vadd.xlane.f32.xlu0 %v338
        %v340 = vpop.xlane.xlu0 %339
        %v341 = vsel %vm332, 1, 0
        %v342 = vsel %vm333, 1, 0
        %v343 = vadd.s32 %v341, %v342
        %v344 = vand.u32 %v343, 65535
        %v345 = vshrl.u32 %v343, 16
        %v346 = vcvt.s32.f32 %v344
        %v347 = vcvt.s32.f32 %v345
        %348 = vadd.xlane.f32.xlu0 %v346
        %v349 = vpop.xlane.xlu0 %348
        %350 = vadd.xlane.f32.xlu0 %v347
        %v351 = vpop.xlane.xlu0 %350
        %v352 = vcvt.f32.s32 %v349
        %v353 = vcvt.f32.s32 %v351
        %v354 = vshll.u32 %v353, 16
        %v355 = vadd.s32 %v354, %v352
        %v356 = vld [vmem:[%s265] sm:$0xff]
        %v357 = vadd.f32 %v356, %v340
        %358 = vst [vmem:[%s265] sm:$0xff] %v357
        %v359 = vld [vmem:[%s272] sm:$0xff]
        %v360 = vadd.s32 %v359, %v355
        %361 = vst [vmem:[%s272] sm:$0xff] %v360
        %s362 = sand.u32 %s116, 1
        %s363 = scalar_lea.sflag [#allocation4], %s362
        %s364 = sand.u32 %s116, 1
        %s365 = smul.addr %s364, 8
        %s366 = scalar_lea.vmem [#allocation7], %s365
        %s367 = sand.u32 %s144, 1
        %s368 = scalar_lea.sflag [#allocation9], %s367
        %s369 = sand.u32 %s144, 1
        %s370 = smul.addr %s369, 8
        %s371 = scalar_lea.vmem [#allocation8], %s370
        // Predicated region
        $region41: #{tpu_custom_call.1} parent=27 // pred_check
          %p372 = pneg %p126
        $region42: #{tpu_custom_call.1} parent=27 // pred_check_branch
          %374 = sbr.rel (%p372) target = $region44
        $region43: #{tpu_custom_call.1} parent=27 // pred_region
          %s376 = ssub.s32 128, 128
          %377 = vsyncadd %s363, %s376
          %s378 = sadd.s32 %s33, %s32
          %s379 = smul.addr %s378, 128
          %s380 = scalar_lea.hbm %s2, %s379
          %s382 = sshll.u32 %s366, 4
          %s383 = int_to_ptr.vmem [resolvable:$true] %s382
          %385 = dma.vmem_to_hbm [thread:$0]  %s383, 128, %s380, %s363
        $region44: #{tpu_custom_call.1} parent=27 // pred_fallthru
          _
        // Predicated region
        $region45: #{tpu_custom_call.1} parent=27 // pred_check
          %p386 = pneg %p154
        $region46: #{tpu_custom_call.1} parent=27 // pred_check_branch
          %388 = sbr.rel (%p386) target = $region48
        $region47: #{tpu_custom_call.1} parent=27 // pred_region
          %s390 = ssub.s32 128, 128
          %391 = vsyncadd %s368, %s390
          %s392 = sadd.s32 %s33, %s32
          %s393 = smul.addr %s392, 128
          %s394 = scalar_lea.hbm %s3, %s393
          %s396 = sshll.u32 %s371, 4
          %s397 = int_to_ptr.vmem [resolvable:$true] %s396
          %399 = dma.vmem_to_hbm [thread:$0]  %s397, 128, %s394, %s368
        $region48: #{tpu_custom_call.1} parent=27 // pred_fallthru
          _
      $region28: #{tpu_custom_call.1} parent=5 // pred_fallthru
        _
      %p400 = scmp.le.s32.totalorder 2, %s22
      // Predicated region
      $region49: #{tpu_custom_call.1} parent=5 // pred_check
        %p401 = pneg %p400
      $region50: #{tpu_custom_call.1} parent=5 // pred_check_branch
        %403 = sbr.rel (%p401) target = $region52
      $region51: #{tpu_custom_call.1} parent=5 // pred_region
        %s404 = ssub.s32 %s22, 2
        // Predicated region
        $region53: #{tpu_custom_call.1} parent=51 // pred_check
          %p405 = pneg %p132
        $region54: #{tpu_custom_call.1} parent=51 // pred_check_branch
          %407 = sbr.rel (%p405) target = $region56
        $region55: #{tpu_custom_call.1} parent=51 // pred_region
          %s408 = sand.u32 %s117, 1
          %s409 = scalar_lea.sflag [#allocation4], %s408
          %s410 = sand.u32 %s117, 1
          %s411 = smul.addr %s410, 8
          %s412 = scalar_lea.vmem [#allocation7], %s411
          %413 = dma.done %s409, 128
        $region56: #{tpu_custom_call.1} parent=51 // pred_fallthru
          _
        // Predicated region
        $region57: #{tpu_custom_call.1} parent=51 // pred_check
          %p414 = pneg %p160
        $region58: #{tpu_custom_call.1} parent=51 // pred_check_branch
          %416 = sbr.rel (%p414) target = $region60
        $region59: #{tpu_custom_call.1} parent=51 // pred_region
          %s417 = sand.u32 %s145, 1
          %s418 = scalar_lea.sflag [#allocation9], %s417
          %s419 = sand.u32 %s145, 1
          %s420 = smul.addr %s419, 8
          %s421 = scalar_lea.vmem [#allocation8], %s420
          %422 = dma.done %s418, 128
        $region60: #{tpu_custom_call.1} parent=51 // pred_fallthru
          _
      $region52: #{tpu_custom_call.1} parent=5 // pred_fallthru
        _
    $region6: #{tpu_custom_call.1} parent=1 // loop_footer
      %s26 = sadd.s32 1, %s22
    $region7: #{tpu_custom_call.1} parent=1 // loop_footer_branch
      %21 = sbr.rel target = $region3
    $region8: #{tpu_custom_call.1} parent=1 // loop_exit
      _
    %423 = vsyncpa [#allocation3], 1
    %s424 = scalar_lea.sflag [#allocation3], 1
    %425 = vsyncpa %s424, 1
    %426 = vsyncpa [#allocation6], 1
    %s427 = scalar_lea.sflag [#allocation6], 1
    %428 = vsyncpa %s427, 1
    %429 = vsyncpa [#allocation4], 1
    %s430 = scalar_lea.sflag [#allocation4], 1
    %431 = vsyncpa %s430, 1
    %432 = vsyncpa [#allocation9], 1
    %s433 = scalar_lea.sflag [#allocation9], 1
    %434 = vsyncpa %s433, 1

</llo_original>
